<compile_context>
chip_gen: v5e
topology: v5e:2x2
jax: 0.10.0
libtpu: 0.0.40
codegen_flags: <defaults>
</compile_context>

<pallas_src>
import jax
import jax.numpy as jnp
from jax.experimental import pallas as pl
from jax.experimental.pallas import tpu as pltpu

_LANE = 128
_VMEM_LIMIT_BYTES = 32 * 1024 * 1024          # safe on v5e/v6e/v7x
_VMEM_PIPELINE_BUDGET = 24 * 1024 * 1024      # headroom under the limit


def _round_up(x, m):
    return ((x + m - 1) // m) * m


def _linear_kernel(x_ref, w_ref, o_ref):
    # Plain MXU matmul on lane-dense tiles: (tile, K) x (K, N) -> (tile, N).
    o_ref[...] = jnp.dot(
        x_ref[...], w_ref[...], preferred_element_type=jnp.float32
    ).astype(o_ref.dtype)


def _block_diag_weight(weight, pack):
    """(action_dim, obs_dim) -> (pack*obs_dim, pack*action_dim) block-diag of W.T."""
    action_dim, obs_dim = weight.shape
    wt = weight.T  # (obs_dim, action_dim)
    eye = jnp.eye(pack, dtype=weight.dtype)
    # wb[p*obs + o, q*act + a] = delta(p, q) * W.T[o, a]
    wb = jnp.einsum("pq,oa->poqa", eye, wt)
    return wb.reshape(pack * obs_dim, pack * action_dim)


def linear_forward(x, weight, *, batch_tile=65536, min_pallas_batch=0):
    """Equivalent to PyTorch nn.Linear(obs_dim, action_dim, bias=False): x @ W.T.

    x:      (B, obs_dim) float32
    weight: (action_dim, obs_dim) float32
    returns (B, action_dim) float32
    """
    B, obs_dim = x.shape
    action_dim, obs_dim_w = weight.shape
    assert obs_dim == obs_dim_w, "weight/obs_dim mismatch"

    # Optional small-batch bypass (per-step inference): one tiny matmul is pure
    # dispatch overhead in Pallas, let XLA handle it.
    if B < min_pallas_batch:
        return jnp.dot(x, weight.T, preferred_element_type=jnp.float32).astype(x.dtype)

    if _LANE % obs_dim == 0 and _LANE % action_dim == 0:
        return _forward_lane_dense(x, weight, batch_tile)
    return _forward_generic(x, weight, batch_tile)


def _forward_lane_dense(x, weight, batch_tile):
    B, obs_dim = x.shape
    action_dim = weight.shape[0]

    # Pack factor so both K = pack*obs_dim and N = pack*action_dim are >= 128
    # (multiples of the 128-lane vreg).  LunarLander (8, 4) -> pack = 32.
    pack = max(_LANE // obs_dim, _LANE // action_dim)
    K = pack * obs_dim
    N = pack * action_dim

    # Zero-pad the batch to a multiple of the pack factor (padded rows produce
    # zero outputs and are sliced off).
    B_pad = _round_up(B, pack)
    if B_pad != B:
        x = jnp.pad(x, ((0, B_pad - B), (0, 0)))
    rows = B_pad // pack

    x_packed = x.reshape(rows, K)                  # contiguous, free
    w_packed = _block_diag_weight(weight, pack)    # (K, N); constant-folded under jit

    # Tile selection: as big as the VMEM budget allows (double-buffered x/out
    # tiles + resident weight), but with >=4 grid steps for v7x megacore when
    # the batch is large.
    usable = _VMEM_PIPELINE_BUDGET - K * N * 4
    max_rows_by_vmem = max(8, usable // (2 * (K + N) * 4))
    rows_tile_max = max(8, min(batch_tile // pack, max_rows_by_vmem))
    if rows <= rows_tile_max:
        rows_tile = rows                           # single step, full-array block
    else:
        target = _round_up(pl.cdiv(rows, 4), 8)    # aim for >=4 parallel steps
        rows_tile = max(8, (min(rows_tile_max, target) // 8) * 8)
    grid = (pl.cdiv(rows, rows_tile),)

    out_packed = pl.pallas_call(
        _linear_kernel,
        out_shape=jax.ShapeDtypeStruct((rows, N), x.dtype),
        grid=grid,
        in_specs=[
            # Streamed, lane-dense x tile.
            pl.BlockSpec((rows_tile, K), lambda i: (i, 0)),
            # Grid-invariant weight: stays resident in VMEM for the whole call.
            pl.BlockSpec((K, N), lambda i: (0, 0)),
        ],
        out_specs=pl.BlockSpec((rows_tile, N), lambda i: (i, 0)),
        compiler_params=pltpu.CompilerParams(
            dimension_semantics=("parallel",),
            vmem_limit_bytes=_VMEM_LIMIT_BYTES,
        ),
    )(x_packed, w_packed)

    out = out_packed.reshape(B_pad, action_dim)    # contiguous, free
    return out[:B] if B_pad != B else out


def _forward_generic(x, weight, batch_tile):
    # Fallback for dims that don't divide the 128-lane vreg: simple batch-tiled
    # kernel; weight is pre-transposed once in the wrapper (it is tiny).
    B, obs_dim = x.shape
    action_dim = weight.shape[0]
    w_t = weight.T

    if B <= batch_tile:
        tb = B
    else:
        tb = max(8, (batch_tile // 8) * 8)
    grid = (pl.cdiv(B, tb),)

    return pl.pallas_call(
        _linear_kernel,
        out_shape=jax.ShapeDtypeStruct((B, action_dim), x.dtype),
        grid=grid,
        in_specs=[
            pl.BlockSpec((tb, obs_dim), lambda i: (i, 0)),
            pl.BlockSpec((obs_dim, action_dim), lambda i: (0, 0)),
        ],
        out_specs=pl.BlockSpec((tb, action_dim), lambda i: (i, 0)),
        compiler_params=pltpu.CompilerParams(
            dimension_semantics=("parallel",),
            vmem_limit_bytes=_VMEM_LIMIT_BYTES,
        ),
    )(x, w_t)


if __name__ == "__main__":
    # LunarLander-v2 dimensions: obs_dim=8, action_dim=4.
    obs_dim, action_dim = 8, 4

    key = jax.random.PRNGKey(0)
    kw, kx1, kx2 = jax.random.split(key, 3)

    # nn.Linear(obs_dim, action_dim, bias=False) -> weight shape (action_dim, obs_dim).
    weight = jax.random.normal(kw, (action_dim, obs_dim), dtype=jnp.float32) * 0.1

    # (1) Tiny inference shape (batch=2): exercises zero-pad + single-step path.
    x_small = jax.random.normal(kx1, (2, obs_dim), dtype=jnp.float32)
    out_small = jax.block_until_ready(linear_forward(x_small, weight))
    ref_small = x_small @ weight.T
    assert out_small.shape == (2, action_dim)
    assert jnp.allclose(out_small, ref_small, atol=1e-4, rtol=1e-4)

    # (2) Batched rollout shape with a deliberately small batch_tile so the test
    #     exercises a multi-step grid (production default tile is ~64K rows).
    x_big = jax.random.normal(kx2, (4096, obs_dim), dtype=jnp.float32)
    out_big = jax.block_until_ready(linear_forward(x_big, weight, batch_tile=1024))
    ref_big = x_big @ weight.T
    assert out_big.shape == (4096, action_dim)
    assert jnp.allclose(out_big, ref_big, atol=1e-4, rtol=1e-4)

    print("KERNEL_OK")
</pallas_src>

<mosaic_0001>
module attributes {stable_mosaic.version = 11 : i64} {
  func.func @_linear_kernel(%arg0: i32, %arg1: memref<1x256xf32, #tpu.memory_space<vmem>>, %arg2: memref<256x128xf32, #tpu.memory_space<vmem>>, %arg3: memref<1x128xf32, #tpu.memory_space<vmem>>) attributes {dimension_semantics = [#tpu.dimension_semantics<parallel>], iteration_bounds = array<i64: 1>, scalar_prefetch = 0 : i64, scratch_operands = 0 : i64, tpu.core_type = #tpu.core_type<tc>, window_params = [{transform_indices = @transform_0, window_bounds = array<i64: 1, 256>}, {pipeline_mode = #tpu.pipeline_mode<synchronous>, transform_indices = @transform_1, window_bounds = array<i64: 256, 128>}, {transform_indices = @transform_2, window_bounds = array<i64: 1, 128>}]} {
    %c0 = arith.constant 0 : index
    %c0_0 = arith.constant 0 : index
    %0 = vector.load %arg1[%c0, %c0_0] : memref<1x256xf32, #tpu.memory_space<vmem>>, vector<1x256xf32>
    %c0_1 = arith.constant 0 : index
    %c0_2 = arith.constant 0 : index
    %1 = vector.load %arg2[%c0_1, %c0_2] : memref<256x128xf32, #tpu.memory_space<vmem>>, vector<256x128xf32>
    %cst = arith.constant dense<0.000000e+00> : vector<1x128xf32>
    %2 = tpu.matmul %0, %1, %cst {dimension_numbers = #tpu.dot_dimension_numbers<[1], [0], [0], [1], [0, 0, 1, 1], [], []>} : vector<1x256xf32>, vector<256x128xf32>, vector<1x128xf32> -> vector<1x128xf32>
    %c0_3 = arith.constant 0 : index
    %c0_4 = arith.constant 0 : index
    %3 = vector.load %arg3[%c0_3, %c0_4] : memref<1x128xf32, #tpu.memory_space<vmem>>, vector<1x128xf32>
    tpu.vector_store %arg3[%c0_3, %c0_4], %2 {strides = array<i32>} : memref<1x128xf32, #tpu.memory_space<vmem>>, vector<1x128xf32>,
    return
  }
  func.func @transform_0(%arg0: i32) -> (i32, i32) {
    %c0_i32 = arith.constant 0 : i32
    %c0_i32_0 = arith.constant 0 : i32
    return %arg0, %c0_i32 : i32, i32
  }
  func.func @transform_1(%arg0: i32) -> (i32, i32) {
    %c0_i32 = arith.constant 0 : i32
    %c0_i32_0 = arith.constant 0 : i32
    %c0_i32_1 = arith.constant 0 : i32
    return %c0_i32, %c0_i32_0 : i32, i32
  }
  func.func @transform_2(%arg0: i32) -> (i32, i32) {
    %c0_i32 = arith.constant 0 : i32
    %c0_i32_0 = arith.constant 0 : i32
    return %arg0, %c0_i32 : i32, i32
  }
}

</mosaic_0001>

<llo_original>
// kernel: tpu_custom_call.1
$region0: #{tpu_custom_call.1}
  #allocation0 [shape = 'u32[]', space=smem, size = 0x4, offset = 0x4, fixed_abs, tag = 'smem constant byte address 0x4 - core index']
  #allocation1 [shape = 'u32[72,128]{1,0:T(1,128)}', space=vmem, size = 0x9000, scoped, tag = 'internal scratch']
  %s0 = inlined_call_operand.hbm [shape: f32[1,256], index: 0, kind: input, shape index: {}]
  %s1 = inlined_call_operand.hbm [shape: f32[256,128], index: 1, kind: input, shape index: {}]
  %s2 = inlined_call_operand.hbm [shape: f32[1,128], index: 2, kind: output, shape index: {}]
  %s3 = sld [smem:[#allocation0]]
  $region26: #{tpu_custom_call.1} parent=0
    _
  %s5 = ssub.s32 1, %s3
  %s6 = scalar_select 0, %s5, %s3
  $region1: #{tpu_custom_call.1} parent=0
    #allocation2 [shape = 'u8[1024]{0}', space=vmem, size = 0x400, scoped, tag = 'input window, operand 0, single buffered']
    #allocation3 [shape = 's32[1]{0}', space=sflag, size = 0x4, scoped, tag = 'scoped memory for tpu_custom_call.1']
    #allocation4 [shape = 's32[1]{0}', space=sflag, size = 0x4, scoped, tag = 'scoped memory for tpu_custom_call.1']
    #allocation5 [shape = 'u8[131072]{0}', space=vmem, size = 0x20000, scoped, tag = 'input window, operand 1, single buffered']
    #allocation6 [shape = 's32[1]{0}', space=sflag, size = 0x4, scoped, tag = 'scoped memory for tpu_custom_call.1']
    #allocation7 [shape = 'u8[512]{0}', space=vmem, size = 0x400, scoped, tag = 'output window, operand 0, single buffered']
    %7 = vsyncpa [#allocation3], 0
    %8 = vsyncpa [#allocation6], 0
    %9 = vsyncpa [#allocation4], 0
    // Predicated region
    $region2: #{tpu_custom_call.1} parent=1 // pred_check
      _
    $region3: #{tpu_custom_call.1} parent=1 // pred_check_branch
      %11 = sbr.rel (0) target = $region5
    $region4: #{tpu_custom_call.1} parent=1 // pred_region
      %13 = vsyncadd [#allocation3], 0
      %s15 = sshll.u32 %s0, 4
      %s16 = int_to_ptr.hbm [resolvable:$true] %s15
      %s17 = sshll.u32 [#allocation2], 4
      %s18 = int_to_ptr.vmem [resolvable:$true] %s17
      %20 = dma.hbm_to_vmem [thread:$0]  %s16, 32, %s18, [#allocation3]
    $region5: #{tpu_custom_call.1} parent=1 // pred_fallthru
      _
    // Predicated region
    $region6: #{tpu_custom_call.1} parent=1 // pred_check
      _
    $region7: #{tpu_custom_call.1} parent=1 // pred_check_branch
      %22 = sbr.rel (0) target = $region9
    $region8: #{tpu_custom_call.1} parent=1 // pred_region
      %24 = vsyncadd [#allocation6], 0
      %s25 = sshll.u32 %s1, 4
      %s26 = int_to_ptr.hbm [resolvable:$true] %s25
      %s27 = sshll.u32 [#allocation5], 4
      %s28 = int_to_ptr.vmem [resolvable:$true] %s27
      %33 = dma.hbm_to_vmem [thread:$0]  %s26, 4096, %s28, [#allocation6], 128, 128, 8
    $region9: #{tpu_custom_call.1} parent=1 // pred_fallthru
      _
    // Predicated region
    $region10: #{tpu_custom_call.1} parent=1 // pred_check
      _
    $region11: #{tpu_custom_call.1} parent=1 // pred_check_branch
      %35 = sbr.rel (0) target = $region13
    $region12: #{tpu_custom_call.1} parent=1 // pred_region
      %37 = dma.done [#allocation3], 32
    $region13: #{tpu_custom_call.1} parent=1 // pred_fallthru
      _
    // Predicated region
    $region14: #{tpu_custom_call.1} parent=1 // pred_check
      _
    $region15: #{tpu_custom_call.1} parent=1 // pred_check_branch
      %39 = sbr.rel (0) target = $region17
    $region16: #{tpu_custom_call.1} parent=1 // pred_region
      %41 = dma.done [#allocation6], 4096
    $region17: #{tpu_custom_call.1} parent=1 // pred_fallthru
      _
    %v42 = vld [vmem:[#allocation2] sm:$0x3]
    %v43 = vld [vmem:[#allocation5] sm:$0xff]
    %v44 = vld [vmem:[#allocation5 + $0x8] sm:$0xff]
    %v45 = vld [vmem:[#allocation5 + $0x10] sm:$0xff]
    %v46 = vld [vmem:[#allocation5 + $0x18] sm:$0xff]
    %v47 = vld [vmem:[#allocation5 + $0x20] sm:$0xff]
    %v48 = vld [vmem:[#allocation5 + $0x28] sm:$0xff]
    %v49 = vld [vmem:[#allocation5 + $0x30] sm:$0xff]
    %v50 = vld [vmem:[#allocation5 + $0x38] sm:$0xff]
    %v51 = vld [vmem:[#allocation5 + $0x40] sm:$0xff]
    %v52 = vld [vmem:[#allocation5 + $0x48] sm:$0xff]
    %v53 = vld [vmem:[#allocation5 + $0x50] sm:$0xff]
    %v54 = vld [vmem:[#allocation5 + $0x58] sm:$0xff]
    %v55 = vld [vmem:[#allocation5 + $0x60] sm:$0xff]
    %v56 = vld [vmem:[#allocation5 + $0x68] sm:$0xff]
    %v57 = vld [vmem:[#allocation5 + $0x70] sm:$0xff]
    %v58 = vld [vmem:[#allocation5 + $0x78] sm:$0xff]
    %v59 = vld [vmem:[#allocation5 + $0x80] sm:$0xff]
    %v60 = vld [vmem:[#allocation5 + $0x88] sm:$0xff]
    %v61 = vld [vmem:[#allocation5 + $0x90] sm:$0xff]
    %v62 = vld [vmem:[#allocation5 + $0x98] sm:$0xff]
    %v63 = vld [vmem:[#allocation5 + $0xa0] sm:$0xff]
    %v64 = vld [vmem:[#allocation5 + $0xa8] sm:$0xff]
    %v65 = vld [vmem:[#allocation5 + $0xb0] sm:$0xff]
    %v66 = vld [vmem:[#allocation5 + $0xb8] sm:$0xff]
    %v67 = vld [vmem:[#allocation5 + $0xc0] sm:$0xff]
    %v68 = vld [vmem:[#allocation5 + $0xc8] sm:$0xff]
    %v69 = vld [vmem:[#allocation5 + $0xd0] sm:$0xff]
    %v70 = vld [vmem:[#allocation5 + $0xd8] sm:$0xff]
    %v71 = vld [vmem:[#allocation5 + $0xe0] sm:$0xff]
    %v72 = vld [vmem:[#allocation5 + $0xe8] sm:$0xff]
    %v73 = vld [vmem:[#allocation5 + $0xf0] sm:$0xff]
    %v74 = vld [vmem:[#allocation5 + $0xf8] sm:$0xff]
    %v76 = vperm.slane %v42, 0
    %v77 = vperm.slane %v42, 1
    %80 = vmatpush.msra.mxu0 %v58
    %81 = vmatpush.msra.mxu0 %v57
    %82 = vmatpush.msra.mxu0 %v56
    %83 = vmatpush.msra.mxu0 %v55
    %84 = vmatpush.msra.mxu0 %v54
    %85 = vmatpush.msra.mxu0 %v53
    %86 = vmatpush.msra.mxu0 %v52
    %87 = vmatpush.msra.mxu0 %v51
    %88 = vmatpush.msra.mxu0 %v50
    %89 = vmatpush.msra.mxu0 %v49
    %90 = vmatpush.msra.mxu0 %v48
    %91 = vmatpush.msra.mxu0 %v47
    %92 = vmatpush.msra.mxu0 %v46
    %93 = vmatpush.msra.mxu0 %v45
    %94 = vmatpush.msra.mxu0 %v44
    %95 = vmatpush.msra.mxu0 %v43
    %96 = vmatmul.f32.gmra.mxu0 %v76
    %v97 = vpop.f32.mrf.mxu0
    %v98 = vadd.f32 0.0, %v97
    %99 = vdwg.mxu0
    %100 = vmatpush.msra.mxu0 %v74
    %101 = vmatpush.msra.mxu0 %v73
    %102 = vmatpush.msra.mxu0 %v72
    %103 = vmatpush.msra.mxu0 %v71
    %104 = vmatpush.msra.mxu0 %v70
    %105 = vmatpush.msra.mxu0 %v69
    %106 = vmatpush.msra.mxu0 %v68
    %107 = vmatpush.msra.mxu0 %v67
    %108 = vmatpush.msra.mxu0 %v66
    %109 = vmatpush.msra.mxu0 %v65
    %110 = vmatpush.msra.mxu0 %v64
    %111 = vmatpush.msra.mxu0 %v63
    %112 = vmatpush.msra.mxu0 %v62
    %113 = vmatpush.msra.mxu0 %v61
    %114 = vmatpush.msra.mxu0 %v60
    %115 = vmatpush.msra.mxu0 %v59
    %116 = vmatmul.f32.gmra.mxu0 %v77
    %v117 = vpop.f32.mrf.mxu0
    %v118 = vadd.f32 %v98, %v117
    %119 = vdwg.mxu0
    %120 = vst [vmem:[#allocation7] sm:$0x1] %v118
    // Predicated region
    $region18: #{tpu_custom_call.1} parent=1 // pred_check
      _
    $region19: #{tpu_custom_call.1} parent=1 // pred_check_branch
      %122 = sbr.rel (0) target = $region21
    $region20: #{tpu_custom_call.1} parent=1 // pred_region
      %124 = vsyncadd [#allocation4], 0
      %s126 = sshll.u32 [#allocation7], 4
      %s127 = int_to_ptr.vmem [resolvable:$true] %s126
      %s128 = sshll.u32 %s2, 4
      %s129 = int_to_ptr.hbm [resolvable:$true] %s128
      %131 = dma.vmem_to_hbm [thread:$0]  %s127, 16, %s129, [#allocation4]
    $region21: #{tpu_custom_call.1} parent=1 // pred_fallthru
      _
    // Predicated region
    $region22: #{tpu_custom_call.1} parent=1 // pred_check
      _
    $region23: #{tpu_custom_call.1} parent=1 // pred_check_branch
      %133 = sbr.rel (0) target = $region25
    $region24: #{tpu_custom_call.1} parent=1 // pred_region
      %135 = dma.done [#allocation4], 16
    $region25: #{tpu_custom_call.1} parent=1 // pred_fallthru
      _
    %136 = vsyncpa [#allocation3], 1
    %137 = vsyncpa [#allocation6], 1
    %138 = vsyncpa [#allocation4], 1

</llo_original>
